<compile_context>
chip_gen: v7x
topology: tpu7x:2x2x1
jax: 0.10.0
libtpu: 0.0.40
codegen_flags: <defaults>
</compile_context>

<pallas_src>
import functools

import jax
import jax.numpy as jnp
from jax import lax
from jax.experimental import pallas as pl
from jax.experimental.pallas import tpu as pltpu

MAX_SPAN_WIDTH = 16
FEATURE_SIZE = 32
DROPOUT_RATE = 0.1
LANES = 128


def _span_emb_kernel(seed_ref, idx_ref, emb_ref, out_ref, *,
                     max_span_width, dropout_rate, training):
    idx = idx_ref[...]                               # (TILE, PACK) raw span widths
    tile, pack = idx.shape
    k = pack * max_span_width                        # packed one-hot width (64)

    # span_width_index = span_width - 1 (clipped so an out-of-range width can't
    # spill into a neighboring packed slot; in-range inputs are unaffected).
    widx = jnp.clip(idx - 1, 0, max_span_width - 1)  # (TILE, PACK)

    # Lane-dense one-hot: packed row r, slot j selects key j*W + widx[r, j].
    # Slot key ranges are disjoint, so OR the per-slot one-hots (4 cheap VPU
    # compares, no XLU reduction).
    k_iota = lax.broadcasted_iota(jnp.int32, (tile, k), 1)
    onehot_b = jnp.zeros((tile, k), dtype=jnp.bool_)
    for j in range(pack):                            # static, fully unrolled
        target = widx[:, j:j + 1] + j * max_span_width          # (TILE, 1)
        onehot_b = onehot_b | (k_iota == target)
    onehot = onehot_b.astype(jnp.float32)

    # (TILE, 64) @ (64, 128) on the MXU -> dense 128-lane output block.
    gathered = jnp.dot(onehot, emb_ref[...], preferred_element_type=jnp.float32)

    if training and dropout_rate > 0.0:
        # Inverted dropout with the HW PRNG; per-tile seed so masks don't
        # repeat across grid steps.  Integer-threshold compare + single where
        # keeps the VPU path tight.
        pltpu.prng_seed(seed_ref[0] + pl.program_id(0))
        bits = pltpu.bitcast(pltpu.prng_random_bits(gathered.shape), jnp.uint32)
        thresh = jnp.uint32(min(int(dropout_rate * 4294967296.0), 4294967295))
        keep = bits >= thresh                        # P(drop) == dropout_rate
        gathered = jnp.where(keep, gathered * (1.0 / (1.0 - dropout_rate)), 0.0)
    # TODO(synk): torch.nn.Dropout uses torch's RNG stream; masks are not
    # bitwise-identical to PyTorch.  Eval mode (identity) is the exact-match path.

    out_ref[...] = gathered


def span_embedding_forward(span_width, embeddings, *, dropout_rate=DROPOUT_RATE,
                           training=False, seed=0, tile_rows=512):
    """span_width: (N,) int, values in [1, MAX_SPAN_WIDTH]. Returns (N, F) f32.

    tile_rows = packed rows per grid step (each packed row holds 128 // F spans);
    default 512 packed rows == 2048 spans == 256 KiB output tile, comfortably
    inside the v7x 32 MiB scoped-VMEM default with double buffering.
    """
    n = span_width.shape[0]
    w, f = embeddings.shape
    assert LANES % f == 0, "FEATURE_SIZE must divide 128 for lane packing"
    pack = LANES // f                                # spans per 128-lane row

    # Pad so the packed row count is a multiple of the tile (tile multiple of 8).
    np_rows = max(1, -(-n // pack))
    tile = min(tile_rows, max(8, ((np_rows + 7) // 8) * 8))
    np_padded = -(-np_rows // tile) * tile
    n_padded = np_padded * pack
    widths = jnp.pad(span_width.astype(jnp.int32), (0, n_padded - n),
                     constant_values=1)              # in-range dummy for pad rows
    idx2d = widths.reshape(np_padded, pack)

    # Block-diagonal packed table: kron(I_pack, E) -> (pack*W, pack*F) = (64, 128).
    table = jnp.kron(jnp.eye(pack, dtype=jnp.float32),
                     embeddings.astype(jnp.float32))

    seed_arr = jnp.array([seed], dtype=jnp.int32)
    kernel = functools.partial(_span_emb_kernel, max_span_width=w,
                               dropout_rate=dropout_rate, training=training)

    out_packed = pl.pallas_call(
        kernel,
        out_shape=jax.ShapeDtypeStruct((np_padded, pack * f), jnp.float32),
        grid_spec=pltpu.PrefetchScalarGridSpec(
            num_scalar_prefetch=1,                   # seed lands in SMEM
            grid=(np_padded // tile,),
            in_specs=[
                pl.BlockSpec((tile, pack), lambda i, seed: (i, 0)),       # widths
                pl.BlockSpec((pack * w, pack * f), lambda i, seed: (0, 0)),  # table
            ],
            out_specs=pl.BlockSpec((tile, pack * f), lambda i, seed: (i, 0)),
        ),
        compiler_params=pltpu.CompilerParams(
            dimension_semantics=("parallel",)),      # megacore-shardable on v7x
    )(seed_arr, idx2d, table)

    # Free row-major reshape back to (N, F) and drop padding.
    return out_packed.reshape(n_padded, f)[:n]


if __name__ == "__main__":
    key = jax.random.PRNGKey(0)
    k_emb, k_idx = jax.random.split(key)

    # Deterministic "parameters": torch.randn(MAX_SPAN_WIDTH, FEATURE_SIZE) * 0.02
    span_width_embeddings = (
        jax.random.normal(k_emb, (MAX_SPAN_WIDTH, FEATURE_SIZE), dtype=jnp.float32) * 0.02)

    # Small example: N = 8 spans, widths in [1, MAX_SPAN_WIDTH].
    span_width = jax.random.randint(k_idx, (8,), 1, MAX_SPAN_WIDTH + 1, dtype=jnp.int32)
    out = jax.block_until_ready(
        span_embedding_forward(span_width, span_width_embeddings, training=False))
    ref = jnp.take(span_width_embeddings, span_width - 1, axis=0)
    assert out.shape == (8, FEATURE_SIZE)
    assert jnp.allclose(out, ref, atol=1e-6), "mismatch vs reference gather (N=8)"

    # Multi-tile + padding path (tiny tile to exercise grid > 1).
    span_width2 = jax.random.randint(jax.random.PRNGKey(1), (50,), 1,
                                     MAX_SPAN_WIDTH + 1, dtype=jnp.int32)
    out2 = jax.block_until_ready(
        span_embedding_forward(span_width2, span_width_embeddings,
                               training=False, tile_rows=8))
    ref2 = jnp.take(span_width_embeddings, span_width2 - 1, axis=0)
    assert out2.shape == (50, FEATURE_SIZE)
    assert jnp.allclose(out2, ref2, atol=1e-6), "mismatch vs reference gather (N=50)"

    print("KERNEL_OK")
</pallas_src>

<mosaic_0001>
module attributes {stable_mosaic.version = 11 : i64} {
  func.func @_span_emb_kernel(%arg0: i32, %arg1: memref<1xi32, #tpu.memory_space<smem>>, %arg2: memref<8x4xi32, #tpu.memory_space<vmem>>, %arg3: memref<64x128xf32, #tpu.memory_space<vmem>>, %arg4: memref<8x128xf32, #tpu.memory_space<vmem>>) attributes {dimension_semantics = [#tpu.dimension_semantics<parallel>], iteration_bounds = array<i64: 1>, scalar_prefetch = 1 : i64, scratch_operands = 0 : i64, tpu.core_type = #tpu.core_type<tc>, window_params = [{transform_indices = @transform_0, window_bounds = array<i64: 8, 4>}, {pipeline_mode = #tpu.pipeline_mode<synchronous>, transform_indices = @transform_1, window_bounds = array<i64: 64, 128>}, {transform_indices = @transform_2, window_bounds = array<i64: 8, 128>}]} {
    %c0 = arith.constant 0 : index
    %c0_0 = arith.constant 0 : index
    %0 = vector.load %arg2[%c0, %c0_0] : memref<8x4xi32, #tpu.memory_space<vmem>>, vector<8x4xi32>
    %c1_i32 = arith.constant 1 : i32
    %1 = vector.broadcast %c1_i32 : i32 to vector<8x4xi32>
    %2 = arith.subi %0, %1 : vector<8x4xi32>
    %c0_i32 = arith.constant 0 : i32
    %c15_i32 = arith.constant 15 : i32
    %3 = vector.broadcast %c0_i32 : i32 to vector<8x4xi32>
    %4 = arith.maxsi %3, %2 : vector<8x4xi32>
    %5 = vector.broadcast %c15_i32 : i32 to vector<8x4xi32>
    %6 = arith.minsi %5, %4 : vector<8x4xi32>
    %7 = tpu.iota {dimensions = array<i32: 1>} : vector<8x64xi32>
    %false = arith.constant false
    %8 = vector.broadcast %false : i1 to vector<8x64xi1>
    %9 = vector.extract_strided_slice %6 {offsets = [0, 0], sizes = [8, 1], strides = [1, 1]} : vector<8x4xi32> to vector<8x1xi32>
    %c0_i32_1 = arith.constant 0 : i32
    %10 = vector.broadcast %c0_i32_1 : i32 to vector<8x1xi32>
    %11 = arith.addi %9, %10 : vector<8x1xi32>
    %12 = vector.broadcast %11 : vector<8x1xi32> to vector<8x64xi32>
    %13 = arith.cmpi eq, %7, %12 : vector<8x64xi32>
    %14 = arith.ori %8, %13 : vector<8x64xi1>
    %15 = vector.extract_strided_slice %6 {offsets = [0, 1], sizes = [8, 1], strides = [1, 1]} : vector<8x4xi32> to vector<8x1xi32>
    %c16_i32 = arith.constant 16 : i32
    %16 = vector.broadcast %c16_i32 : i32 to vector<8x1xi32>
    %17 = arith.addi %15, %16 : vector<8x1xi32>
    %18 = vector.broadcast %17 : vector<8x1xi32> to vector<8x64xi32>
    %19 = arith.cmpi eq, %7, %18 : vector<8x64xi32>
    %20 = arith.ori %14, %19 : vector<8x64xi1>
    %21 = vector.extract_strided_slice %6 {offsets = [0, 2], sizes = [8, 1], strides = [1, 1]} : vector<8x4xi32> to vector<8x1xi32>
    %c32_i32 = arith.constant 32 : i32
    %22 = vector.broadcast %c32_i32 : i32 to vector<8x1xi32>
    %23 = arith.addi %21, %22 : vector<8x1xi32>
    %24 = vector.broadcast %23 : vector<8x1xi32> to vector<8x64xi32>
    %25 = arith.cmpi eq, %7, %24 : vector<8x64xi32>
    %26 = arith.ori %20, %25 : vector<8x64xi1>
    %27 = vector.extract_strided_slice %6 {offsets = [0, 3], sizes = [8, 1], strides = [1, 1]} : vector<8x4xi32> to vector<8x1xi32>
    %c48_i32 = arith.constant 48 : i32
    %28 = vector.broadcast %c48_i32 : i32 to vector<8x1xi32>
    %29 = arith.addi %27, %28 : vector<8x1xi32>
    %30 = vector.broadcast %29 : vector<8x1xi32> to vector<8x64xi32>
    %31 = arith.cmpi eq, %7, %30 : vector<8x64xi32>
    %32 = arith.ori %26, %31 : vector<8x64xi1>
    %33 = arith.extui %32 : vector<8x64xi1> to vector<8x64xi32>
    %34 = arith.sitofp %33 : vector<8x64xi32> to vector<8x64xf32>
    %c0_2 = arith.constant 0 : index
    %c0_3 = arith.constant 0 : index
    %35 = vector.load %arg3[%c0_2, %c0_3] : memref<64x128xf32, #tpu.memory_space<vmem>>, vector<64x128xf32>
    %cst = arith.constant dense<0.000000e+00> : vector<8x128xf32>
    %36 = tpu.matmul %34, %35, %cst {dimension_numbers = #tpu.dot_dimension_numbers<[1], [0], [0], [1], [0, 0, 1, 1], [], []>} : vector<8x64xf32>, vector<64x128xf32>, vector<8x128xf32> -> vector<8x128xf32>
    %c0_4 = arith.constant 0 : index
    %c0_5 = arith.constant 0 : index
    %37 = vector.load %arg4[%c0_4, %c0_5] : memref<8x128xf32, #tpu.memory_space<vmem>>, vector<8x128xf32>
    tpu.vector_store %arg4[%c0_4, %c0_5], %36 {strides = array<i32>} : memref<8x128xf32, #tpu.memory_space<vmem>>, vector<8x128xf32>,
    return
  }
  func.func @transform_0(%arg0: i32, %arg1: memref<1xi32, #tpu.memory_space<smem>>) -> (i32, i32) {
    %c0_i32 = arith.constant 0 : i32
    %c0_i32_0 = arith.constant 0 : i32
    return %arg0, %c0_i32 : i32, i32
  }
  func.func @transform_1(%arg0: i32, %arg1: memref<1xi32, #tpu.memory_space<smem>>) -> (i32, i32) {
    %c0_i32 = arith.constant 0 : i32
    %c0_i32_0 = arith.constant 0 : i32
    %c0_i32_1 = arith.constant 0 : i32
    return %c0_i32, %c0_i32_0 : i32, i32
  }
  func.func @transform_2(%arg0: i32, %arg1: memref<1xi32, #tpu.memory_space<smem>>) -> (i32, i32) {
    %c0_i32 = arith.constant 0 : i32
    %c0_i32_0 = arith.constant 0 : i32
    return %arg0, %c0_i32 : i32, i32
  }
}

</mosaic_0001>

<llo_original>
// kernel: tpu_custom_call.1
$region0: #{tpu_custom_call.1}
  #allocation0 [shape = 'u32[]', space=smem, size = 0x4, offset = 0x4, fixed_abs, tag = 'smem constant byte address 0x4 - core index']
  #allocation1 [shape = 'u32[144,128]{1,0:T(1,128)}', space=vmem, size = 0x12000, scoped, tag = 'internal scratch']
  #allocation2 [shape = 's32[1]{0}', space=sflag, size = 0x4, scoped, tag = 'scoped memory for tpu_custom_call.1']
  #allocation3 [shape = 's32[1]{0:T(128)S(6)}', space=smem, size = 0x200, scoped, tag = 'prefetched SMEM operand 0']
  %s0 = inlined_call_operand.<no memory space> [shape: s32[1], index: 0, kind: input, shape index: {}]
  %s1 = inlined_call_operand.vmem [shape: s32[8,4], index: 1, kind: input, shape index: {}]
  %s2 = inlined_call_operand.hbm [shape: f32[64,128], index: 2, kind: input, shape index: {}]
  %s3 = inlined_call_operand.hbm [shape: f32[8,128], index: 3, kind: output, shape index: {}]
  %s4 = sld [smem:[#allocation0]]
  $region22: #{tpu_custom_call.1} parent=0
    _
  %s6 = ssub.s32 1, %s4
  %s7 = scalar_select 0, %s6, %s4
  %8 = sst [smem:[#allocation3]] %s0
  $region1: #{tpu_custom_call.1} parent=0
    #allocation4 [shape = 'u8[32768]{0}', space=vmem, size = 0x8000, scoped, tag = 'input window, operand 2, single buffered']
    #allocation5 [shape = 's32[1]{0}', space=sflag, size = 0x4, scoped, tag = 'scoped memory for tpu_custom_call.1']
    #allocation6 [shape = 's32[1]{0}', space=sflag, size = 0x4, scoped, tag = 'scoped memory for tpu_custom_call.1']
    #allocation7 [shape = 'u8[4096]{0}', space=vmem, size = 0x1000, scoped, tag = 'output window, operand 0, single buffered']
    %9 = vsyncpa [#allocation5], 0
    %10 = vsyncpa [#allocation6], 0
    // Predicated region
    $region2: #{tpu_custom_call.1} parent=1 // pred_check
      _
    $region3: #{tpu_custom_call.1} parent=1 // pred_check_branch
      %12 = sbr.rel (0) target = $region5
    $region4: #{tpu_custom_call.1} parent=1 // pred_region
      _
    $region5: #{tpu_custom_call.1} parent=1 // pred_fallthru
      _
    // Predicated region
    $region6: #{tpu_custom_call.1} parent=1 // pred_check
      _
    $region7: #{tpu_custom_call.1} parent=1 // pred_check_branch
      %14 = sbr.rel (0) target = $region9
    $region8: #{tpu_custom_call.1} parent=1 // pred_region
      %s16 = ssub.s32 1024, 1024
      %17 = vsyncadd [#allocation5], %s16
      %s18 = sshll.u32 [#allocation4], 4
      %s19 = int_to_ptr.vmem [resolvable:$true] %s18
      %24 = dma.hbm_to_vmem [thread:$0]  %s2, 1024, %s19, [#allocation5], 128, 128, 8
    $region9: #{tpu_custom_call.1} parent=1 // pred_fallthru
      _
    // Predicated region
    $region10: #{tpu_custom_call.1} parent=1 // pred_check
      _
    $region11: #{tpu_custom_call.1} parent=1 // pred_check_branch
      %26 = sbr.rel (0) target = $region13
    $region12: #{tpu_custom_call.1} parent=1 // pred_region
      %27 = dma.done [#allocation5], 1024
    $region13: #{tpu_custom_call.1} parent=1 // pred_fallthru
      _
    %v28 = vld [vmem:[%s1] sm:$0xff]
    %v29 = vsub.s32 %v28, 1
    %vm30 = vcmp.gt.s32.totalorder %v29, 0
    %v31 = vsel %vm30, %v29, 0
    %vm32 = vcmp.lt.s32.totalorder %v31, 15
    %v33 = vsel %vm32, %v31, 15
    %v34 = vlaneseq
    %v35 = vand.u32 %v34, 127
    %36 = vset.pattern.permute.xlu0 0
    %37 = vperm.xlu0 %36, %v33
    %v38 = vpop.permute.xlu0 %37
    %vm39 = vcmp.eq.s32.totalorder %v35, %v38
    %v40 = vadd.s32 %v33, 16
    %41 = vset.pattern.permute.xlu0 1
    %42 = vperm.xlu0 %41, %v40
    %v43 = vpop.permute.xlu0 %42
    %vm44 = vcmp.eq.s32.totalorder %v35, %v43
    %vm45 = vmor %vm39, %vm44
    %v46 = vadd.s32 %v33, 32
    %47 = vset.pattern.permute.xlu0 2
    %48 = vperm.xlu0 %47, %v46
    %v49 = vpop.permute.xlu0 %48
    %vm50 = vcmp.eq.s32.totalorder %v35, %v49
    %vm51 = vmor %vm45, %vm50
    %v52 = vadd.s32 %v33, 48
    %53 = vset.pattern.permute.xlu0 3
    %54 = vperm.xlu0 %53, %v52
    %v55 = vpop.permute.xlu0 %54
    %vm56 = vcmp.eq.s32.totalorder %v35, %v55
    %vm57 = vmor %vm51, %vm56
    %v58 = vsel %vm57, 1, 0
    %v59 = vcvt.s32.f32 %v58
    %v60 = vld [vmem:[#allocation4] sm:$0xff]
    %v61 = vld [vmem:[#allocation4 + $0x8] sm:$0xff]
    %v62 = vld [vmem:[#allocation4 + $0x10] sm:$0xff]
    %v63 = vld [vmem:[#allocation4 + $0x18] sm:$0xff]
    %v64 = vld [vmem:[#allocation4 + $0x20] sm:$0xff]
    %v65 = vld [vmem:[#allocation4 + $0x28] sm:$0xff]
    %v66 = vld [vmem:[#allocation4 + $0x30] sm:$0xff]
    %v67 = vld [vmem:[#allocation4 + $0x38] sm:$0xff]
    %vm68 = vcmask 523264
    %v70 = vsel %vm68, %v59, 0
    %72 = vmatprep.subr.mxu0 0.0
    %73 = vmatpush1.msra.mxu0 %v60
    %74 = vmatprep.subr.mxu0 0.0
    %75 = vmatpush1.msra.mxu0 %v61
    %76 = vmatprep.subr.mxu0 0.0
    %77 = vmatpush1.msra.mxu0 %v62
    %78 = vmatprep.subr.mxu0 0.0
    %79 = vmatpush1.msra.mxu0 %v63
    %80 = vmatprep.subr.mxu0 0.0
    %81 = vmatpush1.msra.mxu0 %v64
    %82 = vmatprep.subr.mxu0 0.0
    %83 = vmatpush1.msra.mxu0 %v65
    %84 = vmatprep.subr.mxu0 0.0
    %85 = vmatpush1.msra.mxu0 %v66
    %86 = vmatprep.subr.mxu0 0.0
    %87 = vmatpush1.msra.mxu0 %v67
    %88 = vmatprep.subr.mxu0 0.0
    %89 = vmatpush1.msra.mxu0 0.0
    %90 = vmatprep.subr.mxu0 0.0
    %91 = vmatpush1.msra.mxu0 0.0
    %92 = vmatprep.subr.mxu0 0.0
    %93 = vmatpush1.msra.mxu0 0.0
    %94 = vmatprep.subr.mxu0 0.0
    %95 = vmatpush1.msra.mxu0 0.0
    %96 = vmatprep.subr.mxu0 0.0
    %97 = vmatpush1.msra.mxu0 0.0
    %98 = vmatprep.subr.mxu0 0.0
    %99 = vmatpush1.msra.mxu0 0.0
    %100 = vmatprep.subr.mxu0 0.0
    %101 = vmatpush1.msra.mxu0 0.0
    %102 = vmatprep.subr.mxu0 0.0
    %103 = vmatpush1.msra.mxu0 0.0
    %104 = vmatprep.subr.mxu0 0.0
    %105 = vmatpush1.msra.mxu0 0.0
    %106 = vmatprep.subr.mxu0 0.0
    %107 = vmatpush1.msra.mxu0 0.0
    %108 = vmatprep.subr.mxu0 0.0
    %109 = vmatpush1.msra.mxu0 0.0
    %110 = vmatprep.subr.mxu0 0.0
    %111 = vmatpush1.msra.mxu0 0.0
    %112 = vmatprep.subr.mxu0 0.0
    %113 = vmatpush1.msra.mxu0 0.0
    %114 = vmatprep.subr.mxu0 0.0
    %115 = vmatpush1.msra.mxu0 0.0
    %116 = vmatprep.subr.mxu0 0.0
    %117 = vmatpush1.msra.mxu0 0.0
    %118 = vmatprep.subr.mxu0 0.0
    %119 = vmatpush1.msra.mxu0 0.0
    %120 = vmatprep.subr.mxu0 0.0
    %121 = vmatpush1.msra.mxu0 0.0
    %122 = vmatprep.subr.mxu0 0.0
    %123 = vmatpush1.msra.mxu0 0.0
    %124 = vmatprep.subr.mxu0 0.0
    %125 = vmatpush1.msra.mxu0 0.0
    %126 = vmatprep.subr.mxu0 0.0
    %127 = vmatpush1.msra.mxu0 0.0
    %128 = vmatprep.subr.mxu0 0.0
    %129 = vmatpush1.msra.mxu0 0.0
    %130 = vmatprep.subr.mxu0 0.0
    %131 = vmatpush1.msra.mxu0 0.0
    %132 = vmatprep.subr.mxu0 0.0
    %133 = vmatpush1.msra.mxu0 0.0
    %134 = vmatprep.subr.mxu0 0.0
    %135 = vmatpush1.msra.mxu0 0.0
    %136 = vmatprep.mubr.f32.mxu0 0.0
    %137 = vmatmul.mubr.f32.gmra.mrb[0].mxu0 %v70
    %v138 = vpop.f32.mrb[0].mxu0
    %v139 = vadd.f32 0.0, %v138
    %v140 = vpop.f32.mrb[0].mxu0
    %141 = vdwg.mxu0
    %142 = vst [vmem:[#allocation7] sm:$0xff] %v139
    // Predicated region
    $region14: #{tpu_custom_call.1} parent=1 // pred_check
      _
    $region15: #{tpu_custom_call.1} parent=1 // pred_check_branch
      %144 = sbr.rel (0) target = $region17
    $region16: #{tpu_custom_call.1} parent=1 // pred_region
      %s146 = ssub.s32 128, 128
      %147 = vsyncadd [#allocation6], %s146
      %s149 = sshll.u32 [#allocation7], 4
      %s150 = int_to_ptr.vmem [resolvable:$true] %s149
      %152 = dma.vmem_to_hbm [thread:$0]  %s150, 128, %s3, [#allocation6]
    $region17: #{tpu_custom_call.1} parent=1 // pred_fallthru
      _
    // Predicated region
    $region18: #{tpu_custom_call.1} parent=1 // pred_check
      _
    $region19: #{tpu_custom_call.1} parent=1 // pred_check_branch
      %154 = sbr.rel (0) target = $region21
    $region20: #{tpu_custom_call.1} parent=1 // pred_region
      %155 = dma.done [#allocation6], 128
    $region21: #{tpu_custom_call.1} parent=1 // pred_fallthru
      _
    %156 = vsyncpa [#allocation5], 1
    %157 = vsyncpa [#allocation6], 1

</llo_original>
